<compile_context>
chip_gen: v5e
topology: v5e:2x2
jax: 0.10.0
libtpu: 0.0.40
codegen_flags: <defaults>
</compile_context>

<pallas_src>
import jax
import jax.numpy as jnp
from jax.experimental import pallas as pl
from jax.experimental.pallas import tpu as pltpu


# ----------------------------------------------------------------------------
# route_args glue (pure python, identical semantics to the PyTorch version)
# ----------------------------------------------------------------------------
def route_args(router, args, depth):
    routed_args = [(dict(), dict()) for _ in range(depth)]
    matched_keys = [key for key in args.keys() if key in router]
    for key in matched_keys:
        val = args[key]
        for d, ((f_args, g_args), routes) in enumerate(
            zip(routed_args, router[key])
        ):
            new_f_args, new_g_args = map(
                lambda route: {key: val} if route else {}, routes
            )
            routed_args[d] = ({**f_args, **new_f_args}, {**g_args, **new_g_args})
    return routed_args


def _round_up(n, m):
    return (n + m - 1) // m * m


# ----------------------------------------------------------------------------
# Pallas kernel: one (row-tile, layer) grid step of the residual stack.
# ----------------------------------------------------------------------------
def _seq_seq_kernel(x_ref, w_ref, b_ref, o_ref, acc_ref):
    # x_ref  : (TM, Dp)  input tile (block index constant along layer axis)
    # w_ref  : (Dp, Dp)  this layer's weight (compute dtype, e.g. bf16)
    # b_ref  : (1, Dp)   this layer's bias (f32)
    # o_ref  : (TM, Dp)  output tile, written on the last layer only
    # acc_ref: (TM, Dp)  f32 VMEM scratch holding the running activation
    d = pl.program_id(1)

    @pl.when(d == 0)
    def _init():
        acc_ref[...] = x_ref[...].astype(jnp.float32)

    x_in = acc_ref[...].astype(w_ref.dtype)  # bf16 MXU operand
    acc_ref[...] += (
        jnp.dot(x_in, w_ref[...], preferred_element_type=jnp.float32)
        + b_ref[...]
    )

    @pl.when(d == pl.num_programs(1) - 1)
    def _finalize():
        o_ref[...] = acc_ref[...].astype(o_ref.dtype)


def sequential_sequence_pallas(x, weights, biases, *, row_tile=256,
                               compute_dtype=jnp.bfloat16):
    """x: (B, N, D); weights: (depth*2, D, D); biases: (depth*2, 1, D)."""
    B, N, D = x.shape
    depth2 = weights.shape[0]
    assert weights.shape == (depth2, D, D)
    assert biases.shape == (depth2, 1, D)

    M = B * N
    Dp = _round_up(D, 128)              # lane-dense feature dim
    # Clamp the row tile for tiny inputs (keep it a multiple of 16 so both
    # f32 and bf16 sublane tilings are satisfied); large inputs use row_tile.
    tm = min(row_tile, _round_up(M, 16))
    Mp = _round_up(M, tm)               # pad rows to a whole number of tiles

    x2d = x.reshape(M, D)
    if Dp != D:
        # Zero-padded feature columns stay identically zero through every
        # residual layer (zero weight cols/rows, zero bias), so the result is
        # exact after slicing.
        x2d = jnp.pad(x2d, ((0, 0), (0, Dp - D)))
        weights = jnp.pad(weights, ((0, 0), (0, Dp - D), (0, Dp - D)))
        biases = jnp.pad(biases, ((0, 0), (0, 0), (0, Dp - D)))
    if Mp != M:
        x2d = jnp.pad(x2d, ((0, Mp - M), (0, 0)))

    w = weights.astype(compute_dtype)   # bf16 weights -> full MXU rate
    b = biases.astype(jnp.float32)      # f32 bias / residual accumulation

    # Explicit VMEM budget: double-buffered x / out / per-layer w,b + f32 acc.
    x_bytes = jnp.dtype(x.dtype).itemsize
    w_bytes = jnp.dtype(compute_dtype).itemsize
    vmem_needed = (
        2 * tm * Dp * x_bytes           # input tile (double-buffered)
        + 2 * tm * Dp * x_bytes         # output tile (double-buffered)
        + tm * Dp * 4                   # f32 accumulator scratch
        + 2 * Dp * Dp * w_bytes         # one layer's weight (double-buffered)
        + 2 * Dp * 4 * 8                # one layer's bias (padded sublanes)
    )
    # At least the 32 MiB scoped default, never above v7x's 64 MiB physical.
    vmem_limit = int(min(max(2 * vmem_needed + (8 << 20), 32 << 20), 64 << 20))

    cost = pl.CostEstimate(
        flops=2 * Mp * Dp * Dp * depth2,
        transcendentals=0,
        bytes_accessed=(Mp * Dp * x_bytes * 2
                        + depth2 * Dp * Dp * w_bytes
                        + depth2 * Dp * 4),
    )

    out2d = pl.pallas_call(
        _seq_seq_kernel,
        out_shape=jax.ShapeDtypeStruct((Mp, Dp), x.dtype),
        grid=(Mp // tm, depth2),
        in_specs=[
            pl.BlockSpec((tm, Dp), lambda i, d: (i, 0)),
            pl.BlockSpec((None, Dp, Dp), lambda i, d: (d, 0, 0)),  # stream layer d
            pl.BlockSpec((None, 1, Dp), lambda i, d: (d, 0, 0)),
        ],
        out_specs=pl.BlockSpec((tm, Dp), lambda i, d: (i, 0)),
        scratch_shapes=[pltpu.VMEM((tm, Dp), jnp.float32)],
        compiler_params=pltpu.CompilerParams(
            dimension_semantics=("parallel", "arbitrary"),
            vmem_limit_bytes=vmem_limit,
        ),
        cost_estimate=cost,
    )(x2d, w, b)

    return out2d[:M, :D].reshape(B, N, D)


# ----------------------------------------------------------------------------
# Pure-JAX reference (mirrors the PyTorch forward and the kernel's compute
# dtype: bf16 matmul operands, f32 accumulation).
# ----------------------------------------------------------------------------
def sequential_sequence_ref(x, weights, biases, args_route={},
                            compute_dtype=jnp.bfloat16, **kwargs):
    depth = weights.shape[0] // 2
    args = route_args(args_route, kwargs, depth)
    acc = x.astype(jnp.float32)
    w = weights.astype(compute_dtype)
    b = biases.astype(jnp.float32)
    for d, (f_args, g_args) in zip(range(depth), args):
        # synthetic affine f/g ignore routed kwargs (none are supplied here)
        for half in (0, 1):   # f then g
            wl, bl = w[2 * d + half], b[2 * d + half]
            acc = acc + (
                jnp.dot(acc.astype(compute_dtype), wl,
                        preferred_element_type=jnp.float32) + bl
            )
    return acc.astype(x.dtype)


if __name__ == "__main__":
    # Small deterministic config: batch=2, seq=8, hidden=32, depth=2 layer pairs.
    B, N, D, depth = 2, 8, 32, 2

    key = jax.random.PRNGKey(0)
    kx, kw, kb = jax.random.split(key, 3)

    x = jax.random.normal(kx, (B, N, D), dtype=jnp.float32)
    # Scale weights down so repeated residual additions stay well-conditioned.
    weights = 0.05 * jax.random.normal(kw, (depth * 2, D, D), dtype=jnp.float32)
    biases = 0.01 * jax.random.normal(kb, (depth * 2, 1, D), dtype=jnp.float32)

    out = sequential_sequence_pallas(x, weights, biases)
    out = jax.block_until_ready(out)

    ref = sequential_sequence_ref(x, weights, biases)
    assert out.shape == (B, N, D)
    assert jnp.allclose(out, ref, atol=1e-2, rtol=1e-2), "mismatch vs reference"

    # TODO(synk): args_route kwarg routing is plain-python glue feeding the
    # sub-layers; the synthetic affine f/g take no kwargs, so nothing is routed.
    print("KERNEL_OK")
</pallas_src>

<mosaic_0001>
module attributes {stable_mosaic.version = 11 : i64} {
  func.func @_seq_seq_kernel(%arg0: i32, %arg1: i32, %arg2: memref<16x128xf32, #tpu.memory_space<vmem>>, %arg3: memref<1x128x128xbf16, #tpu.memory_space<vmem>>, %arg4: memref<1x1x128xf32, #tpu.memory_space<vmem>>, %arg5: memref<16x128xf32, #tpu.memory_space<vmem>>, %arg6: memref<16x128xf32, #tpu.memory_space<vmem>>) attributes {dimension_semantics = [#tpu.dimension_semantics<parallel>, #tpu.dimension_semantics<arbitrary>], iteration_bounds = array<i64: 1, 4>, scalar_prefetch = 0 : i64, scratch_operands = 1 : i64, tpu.core_type = #tpu.core_type<tc>, window_params = [{transform_indices = @transform_0, window_bounds = array<i64: 16, 128>}, {transform_indices = @transform_1, window_bounds = array<i64: 1, 128, 128>}, {transform_indices = @transform_2, window_bounds = array<i64: 1, 1, 128>}, {transform_indices = @transform_3, window_bounds = array<i64: 16, 128>}]} {
    %c0_i32 = arith.constant 0 : i32
    %0 = arith.cmpi eq, %arg1, %c0_i32 : i32
    %1 = arith.extui %0 : i1 to i32
    %c0_i32_0 = arith.constant 0 : i32
    %2 = arith.cmpi ne, %1, %c0_i32_0 : i32
    scf.if %2 {
      %c0_13 = arith.constant 0 : index
      %c0_14 = arith.constant 0 : index
      %18 = vector.load %arg2[%c0_13, %c0_14] : memref<16x128xf32, #tpu.memory_space<vmem>>, vector<16x128xf32>
      %c0_15 = arith.constant 0 : index
      %c0_16 = arith.constant 0 : index
      %19 = vector.load %arg6[%c0_15, %c0_16] : memref<16x128xf32, #tpu.memory_space<vmem>>, vector<16x128xf32>
      tpu.vector_store %arg6[%c0_15, %c0_16], %18 {strides = array<i32>} : memref<16x128xf32, #tpu.memory_space<vmem>>, vector<16x128xf32>,
    } else {
    }
    %c0 = arith.constant 0 : index
    %c0_1 = arith.constant 0 : index
    %3 = vector.load %arg6[%c0, %c0_1] : memref<16x128xf32, #tpu.memory_space<vmem>>, vector<16x128xf32>
    %4 = arith.truncf %3 : vector<16x128xf32> to vector<16x128xbf16>
    %c0_2 = arith.constant 0 : index
    %c0_3 = arith.constant 0 : index
    %5 = vector.load %arg6[%c0_2, %c0_3] : memref<16x128xf32, #tpu.memory_space<vmem>>, vector<16x128xf32>
    %c0_4 = arith.constant 0 : index
    %c0_5 = arith.constant 0 : index
    %c0_6 = arith.constant 0 : index
    %6 = vector.load %arg3[%c0_4, %c0_5, %c0_6] : memref<1x128x128xbf16, #tpu.memory_space<vmem>>, vector<1x128x128xbf16>
    %7 = vector.shape_cast %6 : vector<1x128x128xbf16> to vector<128x128xbf16>
    %cst = arith.constant dense<0.000000e+00> : vector<16x128xf32>
    %8 = tpu.matmul %4, %7, %cst {dimension_numbers = #tpu.dot_dimension_numbers<[1], [0], [0], [1], [0, 0, 1, 1], [], []>} : vector<16x128xbf16>, vector<128x128xbf16>, vector<16x128xf32> -> vector<16x128xf32>
    %c0_7 = arith.constant 0 : index
    %c0_8 = arith.constant 0 : index
    %c0_9 = arith.constant 0 : index
    %9 = vector.load %arg4[%c0_7, %c0_8, %c0_9] : memref<1x1x128xf32, #tpu.memory_space<vmem>>, vector<1x1x128xf32>
    %10 = vector.shape_cast %9 : vector<1x1x128xf32> to vector<1x128xf32>
    %11 = vector.broadcast %10 : vector<1x128xf32> to vector<16x128xf32>
    %12 = arith.addf %8, %11 : vector<16x128xf32>
    %13 = arith.addf %5, %12 : vector<16x128xf32>
    %c0_10 = arith.constant 0 : index
    %c0_11 = arith.constant 0 : index
    %14 = vector.load %arg6[%c0_10, %c0_11] : memref<16x128xf32, #tpu.memory_space<vmem>>, vector<16x128xf32>
    tpu.vector_store %arg6[%c0_10, %c0_11], %13 {strides = array<i32>} : memref<16x128xf32, #tpu.memory_space<vmem>>, vector<16x128xf32>,
    %c3_i32 = arith.constant 3 : i32
    %15 = arith.cmpi eq, %arg1, %c3_i32 : i32
    %16 = arith.extui %15 : i1 to i32
    %c0_i32_12 = arith.constant 0 : i32
    %17 = arith.cmpi ne, %16, %c0_i32_12 : i32
    scf.if %17 {
      %c0_13 = arith.constant 0 : index
      %c0_14 = arith.constant 0 : index
      %18 = vector.load %arg6[%c0_13, %c0_14] : memref<16x128xf32, #tpu.memory_space<vmem>>, vector<16x128xf32>
      %c0_15 = arith.constant 0 : index
      %c0_16 = arith.constant 0 : index
      %19 = vector.load %arg5[%c0_15, %c0_16] : memref<16x128xf32, #tpu.memory_space<vmem>>, vector<16x128xf32>
      tpu.vector_store %arg5[%c0_15, %c0_16], %18 {strides = array<i32>} : memref<16x128xf32, #tpu.memory_space<vmem>>, vector<16x128xf32>,
    } else {
    }
    return
  }
  func.func @transform_0(%arg0: i32, %arg1: i32) -> (i32, i32) {
    %c0_i32 = arith.constant 0 : i32
    %c0_i32_0 = arith.constant 0 : i32
    return %arg0, %c0_i32 : i32, i32
  }
  func.func @transform_1(%arg0: i32, %arg1: i32) -> (i32, i32, i32) {
    %c0_i32 = arith.constant 0 : i32
    %c0_i32_0 = arith.constant 0 : i32
    %c0_i32_1 = arith.constant 0 : i32
    return %arg1, %c0_i32, %c0_i32_0 : i32, i32, i32
  }
  func.func @transform_2(%arg0: i32, %arg1: i32) -> (i32, i32, i32) {
    %c0_i32 = arith.constant 0 : i32
    %c0_i32_0 = arith.constant 0 : i32
    %c0_i32_1 = arith.constant 0 : i32
    return %arg1, %c0_i32, %c0_i32_0 : i32, i32, i32
  }
  func.func @transform_3(%arg0: i32, %arg1: i32) -> (i32, i32) {
    %c0_i32 = arith.constant 0 : i32
    %c0_i32_0 = arith.constant 0 : i32
    return %arg0, %c0_i32 : i32, i32
  }
}

</mosaic_0001>

<llo_original>
// kernel: tpu_custom_call.1
$region0: #{tpu_custom_call.1}
  #allocation0 [shape = 'u32[]', space=smem, size = 0x4, offset = 0x4, fixed_abs, tag = 'smem constant byte address 0x4 - core index']
  #allocation1 [shape = 'u32[72,128]{1,0:T(1,128)}', space=vmem, size = 0x9000, scoped, tag = 'internal scratch']
  #allocation2 [shape = 'f32[16,128]{1,0:T(8,128)}', space=vmem, size = 0x2000, scoped, tag = 'scratch operand']
  %s0 = inlined_call_operand.hbm [shape: f32[16,128], index: 0, kind: input, shape index: {}]
  %s1 = inlined_call_operand.hbm [shape: bf16[4,128,128], index: 1, kind: input, shape index: {}]
  %s2 = inlined_call_operand.hbm [shape: f32[4,1,128], index: 2, kind: input, shape index: {}]
  %s3 = inlined_call_operand.hbm [shape: f32[16,128], index: 3, kind: output, shape index: {}]
  %s4 = sld [smem:[#allocation0]]
  $region65: #{tpu_custom_call.1} parent=0
    _
  %s6 = ssub.s32 1, %s4
  %s7 = scalar_select 0, %s6, %s4
  $region1: #{tpu_custom_call.1} parent=0
    #allocation3 [shape = 'u8[8192]{0}', space=vmem, size = 0x2000, scoped, tag = 'input window, operand 0, single buffered']
    #allocation4 [shape = 's32[2]{0}', space=sflag, size = 0x8, scoped, tag = 'scoped memory for tpu_custom_call.1']
    #allocation5 [shape = 's32[2]{0}', space=sflag, size = 0x8, scoped, tag = 'scoped memory for tpu_custom_call.1']
    #allocation6 [shape = 'u8[65536]{0}', space=vmem, size = 0x10000, scoped, tag = 'input window, operand 1']
    #allocation7 [shape = 's32[2]{0}', space=sflag, size = 0x8, scoped, tag = 'scoped memory for tpu_custom_call.1']
    #allocation8 [shape = 'u8[1024]{0}', space=vmem, size = 0x400, scoped, tag = 'input window, operand 2']
    #allocation9 [shape = 'u8[8192]{0}', space=vmem, size = 0x2000, scoped, tag = 'output window, operand 0, single buffered']
    %8 = vsyncpa [#allocation4], 0
    %9 = vsyncpa [#allocation7], 0
    %s10 = scalar_lea.sflag [#allocation7], 1
    %11 = vsyncpa %s10, 0
    %12 = vsyncpa [#allocation5], 0
    loop: start=0, step=1, limit=6
    $region2: #{tpu_custom_call.1} parent=1 // loop_pre_header
      _
    $region3: #{tpu_custom_call.1} parent=1 // loop_header
      %s14 = sphi 0, %s18
      %p15 = scmp.ge.s32.totalorder %s14, 6
      %s21 = sphi 0, %s33
      %s22 = sphi 0, %s29
      %s23 = sphi 0, %s21
      %s24 = sphi 0, %s22
      %s25 = sphi 0, %s23
      %s26 = sphi 0, %s24
      %s36 = sphi 0, %s38
      %s39 = sphi 0, %s36
      %s40 = sphi 0, %s39
      %s56 = sphi 0, %s40
      %s62 = sphi 0, %s64
      %s65 = sphi 0, %s62
      %s66 = sphi 0, %s65
      %s82 = sphi 0, %s66
      %s88 = sphi 0, %s90
      %s91 = sphi 0, %s88
      %s92 = sphi 0, %s91
      %s108 = sphi 0, %s92
      %s114 = sphi 0, %s116
      %s117 = sphi 0, %s114
      %s118 = sphi 0, %s117
      %s134 = sphi 0, %s118
    $region4: #{tpu_custom_call.1} parent=1 // loop_header_branch
      %17 = sbr.rel (%p15) target = $region8
    $region5: #{tpu_custom_call.1} parent=1 // loop_body
      %s19 = ssub.s32 %s14, 1
      %s20 = ssub.s32 %s14, 2
      %s27 = sadd.s32 1, %s22
      %p28 = scmp.ge.s32.totalorder %s27, 4
      %s29 = scalar_select %p28, 0, %s27
      %s30 = sadd.s32 1, %s21
      %s31 = scalar_select %p28, %s30, %s21
      %p32 = scmp.ge.s32.totalorder %s31, 1
      %s33 = scalar_select %p32, 0, %s31
      %s34 = ssub.s32 %s21, %s33
      %p35 = scmp.eq.s32.totalorder %s34, 0
      %s37 = sadd.s32 %s36, 1
      %s38 = scalar_select %p35, %s36, %s37
      %p41 = pneg %p35
      %p42 = scmp.eq.s32.totalorder %s14, 3
      %p43 = por %p41, %p42
      %p44 = scmp.ne.s32.totalorder %s36, %s39
      %p45 = scmp.eq.s32.totalorder %s14, 0
      %p46 = por %p44, %p45
      %p47 = scmp.ne.s32.totalorder %s36, %s39
      %p48 = scmp.eq.s32.totalorder %s19, 3
      %p49 = por %p47, %p48
      %p50 = scmp.ne.s32.totalorder %s39, %s40
      %p51 = scmp.eq.s32.totalorder %s19, 0
      %p52 = por %p50, %p51
      %p53 = scmp.ne.s32.totalorder %s39, %s40
      %p54 = scmp.eq.s32.totalorder %s20, 3
      %p55 = por %p53, %p54
      %p57 = scmp.ne.s32.totalorder %s40, %s56
      %p58 = scmp.eq.s32.totalorder %s20, 0
      %p59 = por %p57, %p58
      %s60 = ssub.s32 %s22, %s29
      %p61 = scmp.eq.s32.totalorder %s60, 0
      %s63 = sadd.s32 %s62, 1
      %s64 = scalar_select %p61, %s62, %s63
      %p67 = pneg %p61
      %p68 = scmp.eq.s32.totalorder %s14, 3
      %p69 = por %p67, %p68
      %p70 = scmp.ne.s32.totalorder %s62, %s65
      %p71 = scmp.eq.s32.totalorder %s14, 0
      %p72 = por %p70, %p71
      %p73 = scmp.ne.s32.totalorder %s62, %s65
      %p74 = scmp.eq.s32.totalorder %s19, 3
      %p75 = por %p73, %p74
      %p76 = scmp.ne.s32.totalorder %s65, %s66
      %p77 = scmp.eq.s32.totalorder %s19, 0
      %p78 = por %p76, %p77
      %p79 = scmp.ne.s32.totalorder %s65, %s66
      %p80 = scmp.eq.s32.totalorder %s20, 3
      %p81 = por %p79, %p80
      %p83 = scmp.ne.s32.totalorder %s66, %s82
      %p84 = scmp.eq.s32.totalorder %s20, 0
      %p85 = por %p83, %p84
      %s86 = ssub.s32 %s22, %s29
      %p87 = scmp.eq.s32.totalorder %s86, 0
      %s89 = sadd.s32 %s88, 1
      %s90 = scalar_select %p87, %s88, %s89
      %p93 = pneg %p87
      %p94 = scmp.eq.s32.totalorder %s14, 3
      %p95 = por %p93, %p94
      %p96 = scmp.ne.s32.totalorder %s88, %s91
      %p97 = scmp.eq.s32.totalorder %s14, 0
      %p98 = por %p96, %p97
      %p99 = scmp.ne.s32.totalorder %s88, %s91
      %p100 = scmp.eq.s32.totalorder %s19, 3
      %p101 = por %p99, %p100
      %p102 = scmp.ne.s32.totalorder %s91, %s92
      %p103 = scmp.eq.s32.totalorder %s19, 0
      %p104 = por %p102, %p103
      %p105 = scmp.ne.s32.totalorder %s91, %s92
      %p106 = scmp.eq.s32.totalorder %s20, 3
      %p107 = por %p105, %p106
      %p109 = scmp.ne.s32.totalorder %s92, %s108
      %p110 = scmp.eq.s32.totalorder %s20, 0
      %p111 = por %p109, %p110
      %s112 = ssub.s32 %s21, %s33
      %p113 = scmp.eq.s32.totalorder %s112, 0
      %s115 = sadd.s32 %s114, 1
      %s116 = scalar_select %p113, %s114, %s115
      %p119 = pneg %p113
      %p120 = scmp.eq.s32.totalorder %s14, 3
      %p121 = por %p119, %p120
      %p122 = scmp.ne.s32.totalorder %s114, %s117
      %p123 = scmp.eq.s32.totalorder %s14, 0
      %p124 = por %p122, %p123
      %p125 = scmp.ne.s32.totalorder %s114, %s117
      %p126 = scmp.eq.s32.totalorder %s19, 3
      %p127 = por %p125, %p126
      %p128 = scmp.ne.s32.totalorder %s117, %s118
      %p129 = scmp.eq.s32.totalorder %s19, 0
      %p130 = por %p128, %p129
      %p131 = scmp.ne.s32.totalorder %s117, %s118
      %p132 = scmp.eq.s32.totalorder %s20, 3
      %p133 = por %p131, %p132
      %p135 = scmp.ne.s32.totalorder %s118, %s134
      %p136 = scmp.eq.s32.totalorder %s20, 0
      %p137 = por %p135, %p136
      %p138 = scmp.le.s32.totalorder 1, %s14
      %p139 = scmp.lt.s32.totalorder %s14, 5
      %p140 = pnand %p138, %p139
      %p141 = pneg %p140
      // Predicated region
      $region9: #{tpu_custom_call.1} parent=5 // pred_check
        _
      $region10: #{tpu_custom_call.1} parent=5 // pred_check_branch
        %143 = sbr.rel (%p140) target = $region12
      $region11: #{tpu_custom_call.1} parent=5 // pred_region
        %s144 = ssub.s32 %s14, 1
        // Predicated region
        $region13: #{tpu_custom_call.1} parent=11 // pred_check
          %p145 = pneg %p52
        $region14: #{tpu_custom_call.1} parent=11 // pred_check_branch
          %147 = sbr.rel (%p145) target = $region16
        $region15: #{tpu_custom_call.1} parent=11 // pred_region
          %s148 = smul.u32 2, %s23
          %150 = vsyncadd [#allocation4], 0
          %s151 = smul.addr %s148, 8
          %s152 = scalar_lea.hbm %s0, %s151
          %s153 = sshll.u32 %s152, 4
          %s154 = int_to_ptr.hbm [resolvable:$true] %s153
          %s155 = sshll.u32 [#allocation3], 4
          %s156 = int_to_ptr.vmem [resolvable:$true] %s155
          %161 = dma.hbm_to_vmem [thread:$0]  %s154, 256, %s156, [#allocation4], 128, 128, 8
        $region16: #{tpu_custom_call.1} parent=11 // pred_fallthru
          _
      $region12: #{tpu_custom_call.1} parent=5 // pred_fallthru
        _
      %p162 = scmp.lt.s32.totalorder %s14, 4
      // Predicated region
      $region17: #{tpu_custom_call.1} parent=5 // pred_check
        %p163 = pneg %p162
      $region18: #{tpu_custom_call.1} parent=5 // pred_check_branch
        %165 = sbr.rel (%p163) target = $region20
      $region19: #{tpu_custom_call.1} parent=5 // pred_region
        // Predicated region
        $region21: #{tpu_custom_call.1} parent=19 // pred_check
          %p166 = pneg %p72
        $region22: #{tpu_custom_call.1} parent=19 // pred_check_branch
          %168 = sbr.rel (%p166) target = $region24
        $region23: #{tpu_custom_call.1} parent=19 // pred_region
          %s169 = sand.u32 %s14, 1
          %s170 = scalar_lea.sflag [#allocation7], %s169
          %s171 = sand.u32 %s62, 1
          %s172 = smul.addr %s171, 64
          %s173 = scalar_lea.vmem [#allocation6], %s172
          %175 = vsyncadd %s170, 0
          %s176 = smul.addr %s22, 16
          %s177 = smul.addr %s176, 4
          %s178 = scalar_lea.hbm %s1, %s177
          %s179 = sshll.u32 %s178, 4
          %s180 = int_to_ptr.hbm [resolvable:$true] %s179
          %s181 = sshll.u32 %s173, 4
          %s182 = int_to_ptr.vmem [resolvable:$true] %s181
          %187 = dma.hbm_to_vmem [thread:$0]  %s180, 1024, %s182, %s170, 64, 64, 4
        $region24: #{tpu_custom_call.1} parent=19 // pred_fallthru
          _
        // Predicated region
        $region25: #{tpu_custom_call.1} parent=19 // pred_check
          %p188 = pneg %p98
        $region26: #{tpu_custom_call.1} parent=19 // pred_check_branch
          %190 = sbr.rel (%p188) target = $region28
        $region27: #{tpu_custom_call.1} parent=19 // pred_region
          %s191 = sand.u32 %s14, 1
          %s192 = scalar_lea.sflag [#allocation7], %s191
          %s193 = sand.u32 %s88, 1
          %s194 = scalar_lea.vmem [#allocation8], %s193
          %196 = vsyncadd %s192, 0
          %s197 = scalar_lea.hbm %s2, %s22
          %s199 = sshll.u32 %s197, 4
          %s200 = int_to_ptr.hbm [resolvable:$true] %s199
          %s201 = sshll.u32 %s194, 4
          %s202 = int_to_ptr.vmem [resolvable:$true] %s201
          %204 = dma.hbm_to_vmem [thread:$0]  %s200, 16, %s202, %s192
        $region28: #{tpu_custom_call.1} parent=19 // pred_fallthru
          _
      $region20: #{tpu_custom_call.1} parent=5 // pred_fallthru
        _
      %p205 = scmp.le.s32.totalorder 1, %s14
      %p206 = scmp.lt.s32.totalorder %s14, 5
      %p207 = pnand %p205, %p206
      %p208 = pneg %p207
      // Predicated region
      $region29: #{tpu_custom_call.1} parent=5 // pred_check
        _
      $region30: #{tpu_custom_call.1} parent=5 // pred_check_branch
        %210 = sbr.rel (%p207) target = $region32
      $region31: #{tpu_custom_call.1} parent=5 // pred_region
        %s211 = ssub.s32 %s14, 1
        // Predicated region
        $region33: #{tpu_custom_call.1} parent=31 // pred_check
          %p212 = pneg %p52
        $region34: #{tpu_custom_call.1} parent=31 // pred_check_branch
          %214 = sbr.rel (%p212) target = $region36
        $region35: #{tpu_custom_call.1} parent=31 // pred_region
          %216 = dma.done [#allocation4], 256
        $region36: #{tpu_custom_call.1} parent=31 // pred_fallthru
          _
        %s217 = sand.u32 %s19, 1
        %s218 = scalar_lea.sflag [#allocation7], %s217
        %s219 = sand.u32 %s65, 1
        %s220 = smul.addr %s219, 64
        %s221 = scalar_lea.vmem [#allocation6], %s220
        // Predicated region
        $region37: #{tpu_custom_call.1} parent=31 // pred_check
          %p222 = pneg %p78
        $region38: #{tpu_custom_call.1} parent=31 // pred_check_branch
          %224 = sbr.rel (%p222) target = $region40
        $region39: #{tpu_custom_call.1} parent=31 // pred_region
          %226 = dma.done %s218, 1024
        $region40: #{tpu_custom_call.1} parent=31 // pred_fallthru
          _
        %s227 = sand.u32 %s19, 1
        %s228 = scalar_lea.sflag [#allocation7], %s227
        %s229 = sand.u32 %s91, 1
        %s230 = scalar_lea.vmem [#allocation8], %s229
        // Predicated region
        $region41: #{tpu_custom_call.1} parent=31 // pred_check
          %p231 = pneg %p104
        $region42: #{tpu_custom_call.1} parent=31 // pred_check_branch
          %233 = sbr.rel (%p231) target = $region44
        $region43: #{tpu_custom_call.1} parent=31 // pred_region
          %235 = dma.done %s228, 16
        $region44: #{tpu_custom_call.1} parent=31 // pred_fallthru
          _
        %p236 = pneg %p52
        %p237 = pneg %p49
        %s238 = sand.u32 %s19, 1
        %s239 = scalar_lea.sflag [#allocation7], %s238
        %s240 = sand.u32 %s65, 1
        %s241 = smul.addr %s240, 64
        %s242 = scalar_lea.vmem [#allocation6], %s241
        %p243 = pneg %p78
        %p244 = pneg %p75
        %s245 = sand.u32 %s19, 1
        %s246 = scalar_lea.sflag [#allocation7], %s245
        %s247 = sand.u32 %s91, 1
        %s248 = scalar_lea.vmem [#allocation8], %s247
        %p249 = pneg %p104
        %p250 = pneg %p101
        %p251 = pneg %p130
        %p252 = pneg %p127
        %s253 = smul.u32 2, %s23
        %s254 = smul.u32 2, %s23
        %p255 = scmp.eq.s32.totalorder %s24, 0
        // Predicated region
        $region45: #{tpu_custom_call.1} parent=31 // pred_check
          %p256 = pneg %p255
        $region46: #{tpu_custom_call.1} parent=31 // pred_check_branch
          %258 = sbr.rel (%p256) target = $region48
        $region47: #{tpu_custom_call.1} parent=31 // pred_region
          %v259 = vld [vmem:[#allocation3] sm:$0xff]
          %v260 = vld [vmem:[#allocation3 + $0x8] sm:$0xff]
          %261 = vst [vmem:[#allocation2] sm:$0xff] %v259
          %262 = vst [vmem:[#allocation2 + $0x8] sm:$0xff] %v260
        $region48: #{tpu_custom_call.1} parent=31 // pred_fallthru
          _
        %v263 = vld [vmem:[#allocation2] sm:$0xff]
        %v264 = vld [vmem:[#allocation2 + $0x8] sm:$0xff]
        %v265 = vpack.c.bf16 %v264, %v263
        %v266 = vld [vmem:[%s221] sm:$0xf]
        %v267 = vld [vmem:[%s221 + $0x4] sm:$0xf]
        %v268 = vld [vmem:[%s221 + $0x8] sm:$0xf]
        %v269 = vld [vmem:[%s221 + $0xc] sm:$0xf]
        %v270 = vld [vmem:[%s221 + $0x10] sm:$0xf]
        %v271 = vld [vmem:[%s221 + $0x14] sm:$0xf]
        %v272 = vld [vmem:[%s221 + $0x18] sm:$0xf]
        %v273 = vld [vmem:[%s221 + $0x1c] sm:$0xf]
        %v274 = vld [vmem:[%s221 + $0x20] sm:$0xf]
        %v275 = vld [vmem:[%s221 + $0x24] sm:$0xf]
        %v276 = vld [vmem:[%s221 + $0x28] sm:$0xf]
        %v277 = vld [vmem:[%s221 + $0x2c] sm:$0xf]
        %v278 = vld [vmem:[%s221 + $0x30] sm:$0xf]
        %v279 = vld [vmem:[%s221 + $0x34] sm:$0xf]
        %v280 = vld [vmem:[%s221 + $0x38] sm:$0xf]
        %v281 = vld [vmem:[%s221 + $0x3c] sm:$0xf]
        %v282 = vld [vmem:[%s230] sm:$0x1]
        %v284 = vperm.slane %v282, 0
        %v302 = vunpack.c.l.b16 %v266
        %v303 = vunpack.c.l.b16 %v267
        %v304 = vunpack.c.l.b16 %v268
        %v305 = vunpack.c.l.b16 %v269
        %v306 = vunpack.c.l.b16 %v270
        %v307 = vunpack.c.l.b16 %v271
        %v308 = vunpack.c.l.b16 %v272
        %v309 = vunpack.c.l.b16 %v273
        %v310 = vunpack.c.l.b16 %v274
        %v311 = vunpack.c.l.b16 %v275
        %v312 = vunpack.c.l.b16 %v276
        %v313 = vunpack.c.l.b16 %v277
        %v314 = vunpack.c.l.b16 %v278
        %v315 = vunpack.c.l.b16 %v279
        %v316 = vunpack.c.l.b16 %v280
        %v317 = vunpack.c.l.b16 %v281
        %v318 = vpack.c.b16 %v303, %v302
        %v319 = vpack.c.b16 %v305, %v304
        %v320 = vpack.c.b16 %v307, %v306
        %v321 = vpack.c.b16 %v309, %v308
        %v322 = vpack.c.b16 %v311, %v310
        %v323 = vpack.c.b16 %v313, %v312
        %v324 = vpack.c.b16 %v315, %v314
        %v325 = vpack.c.b16 %v317, %v316
        %334 = vmatpush.bf16.msra.mxu0 %v325
        %335 = vmatpush.bf16.msra.mxu0 %v324
        %336 = vmatpush.bf16.msra.mxu0 %v323
        %337 = vmatpush.bf16.msra.mxu0 %v322
        %338 = vmatpush.bf16.msra.mxu0 %v321
        %339 = vmatpush.bf16.msra.mxu0 %v320
        %340 = vmatpush.bf16.msra.mxu0 %v319
        %341 = vmatpush.bf16.msra.mxu0 %v318
        %342 = vmatmul.bf16.gmra.mxu0 %v265
        %v343 = vpop.f32.mrf.mxu0
        %v344 = vadd.f32 %v284, %v343
        %v345 = vpop.f32.mrf.mxu0
        %v346 = vadd.f32 %v284, %v345
        %347 = vdwg.mxu0
        %v348 = vadd.f32 %v263, %v344
        %v349 = vadd.f32 %v264, %v346
        %350 = vst [vmem:[#allocation2] sm:$0xff] %v348
        %351 = vst [vmem:[#allocation2 + $0x8] sm:$0xff] %v349
        %p352 = scmp.eq.s32.totalorder %s24, 3
        // Predicated region
        $region49: #{tpu_custom_call.1} parent=31 // pred_check
          %p353 = pneg %p352
        $region50: #{tpu_custom_call.1} parent=31 // pred_check_branch
          %355 = sbr.rel (%p353) target = $region52
        $region51: #{tpu_custom_call.1} parent=31 // pred_region
          %v356 = vld [vmem:[#allocation2] sm:$0xff]
          %v357 = vld [vmem:[#allocation2 + $0x8] sm:$0xff]
          %358 = vst [vmem:[#allocation9] sm:$0xff] %v356
          %359 = vst [vmem:[#allocation9 + $0x8] sm:$0xff] %v357
        $region52: #{tpu_custom_call.1} parent=31 // pred_fallthru
          _
        // Predicated region
        $region53: #{tpu_custom_call.1} parent=31 // pred_check
          %p360 = pneg %p127
        $region54: #{tpu_custom_call.1} parent=31 // pred_check_branch
          %362 = sbr.rel (%p360) target = $region56
        $region55: #{tpu_custom_call.1} parent=31 // pred_region
          %s363 = smul.u32 2, %s23
          %365 = vsyncadd [#allocation5], 0
          %s366 = smul.addr %s363, 8
          %s367 = scalar_lea.hbm %s3, %s366
          %s368 = sshll.u32 [#allocation9], 4
          %s369 = int_to_ptr.vmem [resolvable:$true] %s368
          %s370 = sshll.u32 %s367, 4
          %s371 = int_to_ptr.hbm [resolvable:$true] %s370
          %376 = dma.vmem_to_hbm [thread:$0]  %s369, 256, %s371, [#allocation5], 128, 128, 8
        $region56: #{tpu_custom_call.1} parent=31 // pred_fallthru
          _
        // Predicated region
        $region57: #{tpu_custom_call.1} parent=31 // pred_check
          %p377 = pneg %p127
        $region58: #{tpu_custom_call.1} parent=31 // pred_check_branch
          %379 = sbr.rel (%p377) target = $region60
        $region59: #{tpu_custom_call.1} parent=31 // pred_region
          %381 = dma.done [#allocation5], 256
        $region60: #{tpu_custom_call.1} parent=31 // pred_fallthru
          _
      $region32: #{tpu_custom_call.1} parent=5 // pred_fallthru
        _
      %p382 = scmp.le.s32.totalorder 2, %s14
      // Predicated region
      $region61: #{tpu_custom_call.1} parent=5 // pred_check
        %p383 = pneg %p382
      $region62: #{tpu_custom_call.1} parent=5 // pred_check_branch
        %385 = sbr.rel (%p383) target = $region64
      $region63: #{tpu_custom_call.1} parent=5 // pred_region
        %s386 = ssub.s32 %s14, 2
      $region64: #{tpu_custom_call.1} parent=5 // pred_fallthru
        _
    $region6: #{tpu_custom_call.1} parent=1 // loop_footer
      %s18 = sadd.s32 1, %s14
    $region7: #{tpu_custom_call.1} parent=1 // loop_footer_branch
      %13 = sbr.rel target = $region3
    $region8: #{tpu_custom_call.1} parent=1 // loop_exit
      _
    %387 = vsyncpa [#allocation4], 1
    %s388 = scalar_lea.sflag [#allocation4], 1
    %389 = vsyncpa %s388, 1
    %390 = vsyncpa [#allocation7], 1
    %s391 = scalar_lea.sflag [#allocation7], 1
    %392 = vsyncpa %s391, 1
    %393 = vsyncpa [#allocation5], 1
    %s394 = scalar_lea.sflag [#allocation5], 1
    %395 = vsyncpa %s394, 1

</llo_original>
